<compile_context>
chip_gen: v6e
topology: v6e:2x2x1
jax: 0.10.0
libtpu: 0.0.40
codegen_flags: <defaults>
</compile_context>

<pallas_src>
import jax
import jax.numpy as jnp
from jax.experimental import pallas as pl
from jax.experimental.pallas import tpu as pltpu

EPSILON = 1e-8


# ----------------------------------------------------------------------------
# Kernels
# ----------------------------------------------------------------------------
def _pixelnorm_fused_kernel(x_ref, o_ref):
    """Whole slab resident in VMEM: global mean(x^2) -> rsqrt -> scale."""
    xf = x_ref[...].astype(jnp.float32)
    mean_sq = jnp.mean(xf * xf)
    inv_scale = jax.lax.rsqrt(mean_sq + EPSILON)   # single EUP op, no sqrt->recip chain
    o_ref[...] = (xf * inv_scale).astype(o_ref.dtype)


def _sumsq_kernel(x_ref, ssq_ref):
    """Tiled pass 1: accumulate global sum(x^2) across row tiles (resident (1,1) out)."""
    @pl.when(pl.program_id(0) == 0)
    def _():
        ssq_ref[...] = jnp.zeros_like(ssq_ref)
    xf = x_ref[...].astype(jnp.float32)
    # TODO(synk): for >~16M-element tensors a compensated (Kahan) accumulation would
    # tighten tolerance; plain f32 accumulation is sufficient for GAN activation sizes.
    ssq_ref[...] += jnp.sum(xf * xf)


def _scale_kernel(inv_ref, x_ref, o_ref):
    """Tiled pass 2: x * inv_scale, scalar broadcast from SMEM."""
    inv = inv_ref[0, 0]
    o_ref[...] = (x_ref[...].astype(jnp.float32) * inv).astype(o_ref.dtype)


# ----------------------------------------------------------------------------
# Layout / sizing helpers
# ----------------------------------------------------------------------------
def _lane_dense_shape(total):
    """Pick (rows, cols) with cols a multiple of 128 dividing total, rows >= 8 if possible."""
    candidates = (8192, 4096, 2048, 1024, 512, 256, 128)
    for cand in candidates:                      # prefer wide, but keep >= 8 rows
        if total % cand == 0 and total // cand >= 8:
            return (total // cand, cand)
    for cand in candidates:                      # any lane-dense width
        if total % cand == 0:
            return (total // cand, cand)
    # Not a multiple of 128: correctness-only fallback (masked stores on a tiny slab).
    return (1, total)


def _vmem_budget_bytes():
    """Conservative per-kernel VMEM budget (~75% of physical; 48 MiB fallback)."""
    cap = 64 << 20
    try:
        info = pltpu.get_tpu_info()
        cap = int(getattr(info, "vmem_capacity_bytes", cap))
    except Exception:
        pass
    return min(int(cap * 0.75), 112 << 20)


def _pick_tile_rows(rows, cols):
    """Largest multiple-of-8 divisor of `rows` whose f32 tile stays <= ~8 MiB."""
    bytes_per_row = cols * 4
    max_rows = max(8, (8 << 20) // bytes_per_row)
    best = None
    t = 8
    while t <= min(rows, max_rows):
        if rows % t == 0:
            best = t
        t += 8
    if best is None:
        # TODO(synk): ragged row counts fall back to a single full-slab tile.
        return rows
    return best


# ----------------------------------------------------------------------------
# Pallas call wrappers
# ----------------------------------------------------------------------------
def _pixelnorm_single_block(x2d, vmem_limit):
    # memory_space-only specs: whole slab placed in VMEM once, no double-buffering.
    return pl.pallas_call(
        _pixelnorm_fused_kernel,
        out_shape=jax.ShapeDtypeStruct(x2d.shape, x2d.dtype),
        in_specs=[pl.BlockSpec(memory_space=pltpu.MemorySpace.VMEM)],
        out_specs=pl.BlockSpec(memory_space=pltpu.MemorySpace.VMEM),
        compiler_params=pltpu.CompilerParams(vmem_limit_bytes=int(vmem_limit)),
    )(x2d)


def _pixelnorm_tiled_2d(x2d, tile_rows, vmem_limit):
    rows, cols = x2d.shape
    assert rows % tile_rows == 0, "tile_rows must divide slab rows"
    num_tiles = rows // tile_rows
    total = rows * cols

    # Pass 1: global sum of squares (reduction axis -> "arbitrary", resident output).
    ssq = pl.pallas_call(
        _sumsq_kernel,
        out_shape=jax.ShapeDtypeStruct((1, 1), jnp.float32),
        grid=(num_tiles,),
        in_specs=[pl.BlockSpec((tile_rows, cols), lambda i: (i, 0))],
        out_specs=pl.BlockSpec((1, 1), lambda i: (0, 0)),
        compiler_params=pltpu.CompilerParams(
            dimension_semantics=("arbitrary",),
            vmem_limit_bytes=int(vmem_limit)),
    )(x2d)

    inv_scale = jax.lax.rsqrt(ssq / total + EPSILON)          # (1,1) f32

    # Pass 2: elementwise scale (fully parallel, pipelined row tiles).
    out2d = pl.pallas_call(
        _scale_kernel,
        out_shape=jax.ShapeDtypeStruct(x2d.shape, x2d.dtype),
        grid=(num_tiles,),
        in_specs=[pl.BlockSpec(memory_space=pltpu.MemorySpace.SMEM),
                  pl.BlockSpec((tile_rows, cols), lambda i: (i, 0))],
        out_specs=pl.BlockSpec((tile_rows, cols), lambda i: (i, 0)),
        compiler_params=pltpu.CompilerParams(
            dimension_semantics=("parallel",),
            vmem_limit_bytes=int(vmem_limit)),
    )(inv_scale, x2d)
    return out2d


def _pixelnorm_tiled(x2d, vmem_limit):
    rows, cols = x2d.shape
    tile_rows = _pick_tile_rows(rows, cols)
    return _pixelnorm_tiled_2d(x2d, tile_rows, vmem_limit)


def pixel_wise_normalization(x):
    """x: any-shape array (e.g. NCHW). Returns same shape/dtype, x / sqrt(mean(x^2)+eps)."""
    orig_shape = x.shape
    total = x.size
    x2d = x.reshape(_lane_dense_shape(total))

    budget = _vmem_budget_bytes()
    # Rough single-block VMEM need: in + out + f32 temporaries (conservative 3x f32).
    est_single = 3 * total * 4 + (2 << 20)

    if est_single <= budget:
        out2d = _pixelnorm_single_block(x2d, budget)
    else:
        out2d = _pixelnorm_tiled(x2d, budget)

    return out2d.reshape(orig_shape)


# ----------------------------------------------------------------------------
# Reference & test
# ----------------------------------------------------------------------------
def _reference(x):
    xf = x.astype(jnp.float32)
    scale = jnp.sqrt(jnp.mean(xf * xf) + EPSILON)
    return (xf / scale).astype(x.dtype)


if __name__ == "__main__":
    key = jax.random.PRNGKey(0)
    x = jax.random.normal(key, (2, 4, 16, 16), dtype=jnp.float32)

    out = jax.block_until_ready(pixel_wise_normalization(x))
    ref = _reference(x)
    assert out.shape == x.shape and out.dtype == x.dtype
    assert jnp.allclose(out, ref, atol=1e-5, rtol=1e-5), "fused path mismatch"

    # Also exercise the tiled two-pass fallback (forced tiling on a small slab) so
    # both code paths are compiled and checked on-device.
    x_big = jax.random.normal(jax.random.PRNGKey(0), (2, 4, 32, 32), dtype=jnp.float32)
    x2d_big = x_big.reshape(32, 256)                  # 4 tiles of (8, 256)
    out2d_big = jax.block_until_ready(
        _pixelnorm_tiled_2d(x2d_big, tile_rows=8, vmem_limit=48 << 20))
    ref_big = _reference(x_big).reshape(32, 256)
    assert jnp.allclose(out2d_big, ref_big, atol=1e-5, rtol=1e-5), "tiled path mismatch"

    print("KERNEL_OK")
</pallas_src>

<mosaic_0001>
module attributes {stable_mosaic.version = 11 : i64} {
  func.func @_pixelnorm_fused_kernel(%arg0: memref<8x256xf32, #tpu.memory_space<vmem>>, %arg1: memref<8x256xf32, #tpu.memory_space<vmem>>) attributes {dimension_semantics = [], scalar_prefetch = 0 : i64, scratch_operands = 0 : i64, tpu.core_type = #tpu.core_type<tc>} {
    %c0 = arith.constant 0 : index
    %c0_0 = arith.constant 0 : index
    %0 = vector.load %arg0[%c0, %c0_0] : memref<8x256xf32, #tpu.memory_space<vmem>>, vector<8x256xf32>
    %1 = arith.mulf %0, %0 : vector<8x256xf32>
    %2 = vector.shape_cast %1 : vector<8x256xf32> to vector<1x8x256xf32>
    %cst = arith.constant dense<0.000000e+00> : vector<1xf32>
    %3 = vector.multi_reduction <add>, %2, %cst [1, 2] : vector<1x8x256xf32> to vector<1xf32>
    %4 = vector.shape_cast %3 : vector<1xf32> to vector<1x1x1xf32>
    %5 = vector.extract %4[0, 0, 0] : f32 from vector<1x1x1xf32>
    %cst_1 = arith.constant 2.048000e+03 : f32
    %6 = arith.divf %5, %cst_1 : f32
    %cst_2 = arith.constant 9.99999993E-9 : f32
    %7 = arith.addf %6, %cst_2 : f32
    %8 = math.rsqrt %7 : f32
    %9 = vector.broadcast %8 : f32 to vector<8x256xf32>
    %10 = arith.mulf %0, %9 : vector<8x256xf32>
    %c0_3 = arith.constant 0 : index
    %c0_4 = arith.constant 0 : index
    %11 = vector.load %arg1[%c0_3, %c0_4] : memref<8x256xf32, #tpu.memory_space<vmem>>, vector<8x256xf32>
    tpu.vector_store %arg1[%c0_3, %c0_4], %10 {strides = array<i32>} : memref<8x256xf32, #tpu.memory_space<vmem>>, vector<8x256xf32>,
    return
  }
}

</mosaic_0001>

<llo_original>
// kernel: tpu_custom_call.1
$region0: #{tpu_custom_call.1}
  #allocation0 [shape = 'u32[]', space=smem, size = 0x4, offset = 0x4, fixed_abs, tag = 'smem constant byte address 0x4 - core index']
  #allocation1 [shape = 'u32[144,128]{1,0:T(1,128)}', space=vmem, size = 0x12000, scoped, tag = 'internal scratch']
  %s0 = inlined_call_operand.hbm [shape: f32[8,256], index: 0, kind: input, shape index: {}]
  %s1 = inlined_call_operand.hbm [shape: f32[8,256], index: 1, kind: output, shape index: {}]
  %s2 = sld [smem:[#allocation0]]
  $region18: #{tpu_custom_call.1} parent=0
    _
  %s4 = ssub.s32 1, %s2
  %s5 = scalar_select 0, %s4, %s2
  $region1: #{tpu_custom_call.1} parent=0
    #allocation2 [shape = 'u8[8192]{0}', space=vmem, size = 0x2000, scoped, tag = 'input window, operand 0, single buffered']
    #allocation3 [shape = 's32[1]{0}', space=sflag, size = 0x4, scoped, tag = 'scoped memory for tpu_custom_call.1']
    #allocation4 [shape = 's32[1]{0}', space=sflag, size = 0x4, scoped, tag = 'scoped memory for tpu_custom_call.1']
    #allocation5 [shape = 'u8[8192]{0}', space=vmem, size = 0x2000, scoped, tag = 'output window, operand 0, single buffered']
    %6 = vsyncpa [#allocation3], 0
    %7 = vsyncpa [#allocation4], 0
    // Predicated region
    $region2: #{tpu_custom_call.1} parent=1 // pred_check
      _
    $region3: #{tpu_custom_call.1} parent=1 // pred_check_branch
      %9 = sbr.rel (0) target = $region5
    $region4: #{tpu_custom_call.1} parent=1 // pred_region
      %s11 = ssub.s32 256, 256
      %12 = vsyncadd [#allocation3], %s11
      %s14 = sshll.u32 [#allocation2], 4
      %s15 = int_to_ptr.vmem [resolvable:$true] %s14
      %17 = dma.hbm_to_vmem [thread:$0]  %s0, 256, %s15, [#allocation3]
    $region5: #{tpu_custom_call.1} parent=1 // pred_fallthru
      _
    // Predicated region
    $region6: #{tpu_custom_call.1} parent=1 // pred_check
      _
    $region7: #{tpu_custom_call.1} parent=1 // pred_check_branch
      %19 = sbr.rel (0) target = $region9
    $region8: #{tpu_custom_call.1} parent=1 // pred_region
      %20 = dma.done [#allocation3], 256
    $region9: #{tpu_custom_call.1} parent=1 // pred_fallthru
      _
    %v21 = vld [vmem:[#allocation2] sm:$0xff]
    %v22 = vld [vmem:[#allocation2 + $0x8] sm:$0xff]
    %v23 = vmul.f32 %v21, %v21
    %v24 = vmul.f32 %v22, %v22
    %v25 = vadd.f32 %v23, %v24
    %26 = vadd.xlane.f32.xlu0 %v25
    %v27 = vpop.xlane.xlu0 %26
    %v28 = vrot.slane %v27, 4
    %v29 = vadd.f32 %v27, %v28
    %v30 = vrot.slane %v29, 2
    %v31 = vadd.f32 %v29, %v30
    %v32 = vrot.slane %v31, 1
    %v33 = vadd.f32 %v31, %v32
    %s34 = vtos %v33
    %v35 = vrcp.pop 2048.0
    %s36 = vtos %v35
    %s37 = smul.f32 %s34, %s36
    %s38 = sadd.f32 %s37, 1e-08
    %v39 = vstv %s38
    %v40 = vrsqrt.pop %v39
    %s41 = vtos %v40
    %v42 = vstv %s41
    %v43 = vmul.f32 %v21, %v42
    %v44 = vmul.f32 %v22, %v42
    %45 = vst [vmem:[#allocation5] sm:$0xff] %v43
    %46 = vst [vmem:[#allocation5 + $0x8] sm:$0xff] %v44
    // Predicated region
    $region10: #{tpu_custom_call.1} parent=1 // pred_check
      _
    $region11: #{tpu_custom_call.1} parent=1 // pred_check_branch
      %48 = sbr.rel (0) target = $region13
    $region12: #{tpu_custom_call.1} parent=1 // pred_region
      %s50 = ssub.s32 256, 256
      %51 = vsyncadd [#allocation4], %s50
      %s53 = sshll.u32 [#allocation5], 4
      %s54 = int_to_ptr.vmem [resolvable:$true] %s53
      %56 = dma.vmem_to_hbm [thread:$0]  %s54, 256, %s1, [#allocation4]
    $region13: #{tpu_custom_call.1} parent=1 // pred_fallthru
      _
    // Predicated region
    $region14: #{tpu_custom_call.1} parent=1 // pred_check
      _
    $region15: #{tpu_custom_call.1} parent=1 // pred_check_branch
      %58 = sbr.rel (0) target = $region17
    $region16: #{tpu_custom_call.1} parent=1 // pred_region
      %59 = dma.done [#allocation4], 256
    $region17: #{tpu_custom_call.1} parent=1 // pred_fallthru
      _
    %60 = vsyncpa [#allocation3], 1
    %61 = vsyncpa [#allocation4], 1

</llo_original>
